<compile_context>
chip_gen: v7x
topology: tpu7x:2x2x1
jax: 0.10.0
libtpu: 0.0.40
codegen_flags: <defaults>
</compile_context>

<pallas_src>
import jax
import jax.numpy as jnp
from jax.experimental import pallas as pl
from jax.experimental.pallas import tpu as pltpu

LANE = 128
SUBLANE = 8
MAX_ROWS_PER_STEP = 2048          # 2048 rows x 128 lanes = 256K pixels / grid step
                                  # -> ~1 MiB in + 4 MiB out per tile, ~10 MiB double-buffered


def _round_up(x, m):
    return (x + m - 1) // m * m


def _cdiv(a, b):
    return (a + b - 1) // b


def _affine_kernel(x_ref, w_ref, b_ref, o_ref):
    # x_ref : (1, 1, R, 128) VMEM  -- dense (R,128) tile
    # w_ref : (4,) f32 SMEM, b_ref : (4,) f32 SMEM
    # o_ref : (1, 4, R, 128) VMEM
    x = x_ref[0, 0]                                  # (R, 128) dense load
    for c in range(4):                               # 4 scalar-splat FMAs, dense stores
        o_ref[0, c] = x * w_ref[c] + b_ref[c]


def model_forward(x_nchw, params):
    """x_nchw: (N, 1, H, W) float32. Returns (N, 4, H, W) float32 (NCHW)."""
    (w1, b1), (w2, b2), (w3, b3) = params
    N, Cin, H, W = x_nchw.shape
    assert Cin == 1

    # Collapse the three 1x1 transposed convs into one affine map (tiny host math).
    w_eff = (w1 @ w2 @ w3).reshape(4).astype(jnp.float32)      # (4,)
    b_eff = ((b1 @ w2 + b2) @ w3 + b3).astype(jnp.float32)     # (4,)

    HW = H * W
    rows = _cdiv(HW, LANE)                                     # lane dim fixed at 128

    # Row blocking (sublane-dense tiles).
    if rows > MAX_ROWS_PER_STEP:
        row_block = MAX_ROWS_PER_STEP
    elif N == 1 and rows >= 2 * SUBLANE:
        # Split the spatial axis so both v7x TensorCores get at least one grid step.
        row_block = _round_up(_cdiv(rows, 2), SUBLANE)
    else:
        row_block = rows                    # full-extent block (legal even if not %8)
    rows_pad = _round_up(rows, row_block)
    hw_pad = rows_pad * LANE

    # NCHW with C==1: flattening to pixel rows is a pure reshape (no transpose).
    x_rows = x_nchw.reshape(N, 1, HW)
    if hw_pad != HW:
        # Only a ragged tail is padded; at lane-aligned shapes this branch is skipped.
        x_rows = jnp.pad(x_rows, ((0, 0), (0, 0), (0, hw_pad - HW)))
    x_tiled = x_rows.reshape(N, 1, rows_pad, LANE)

    grid = (N, rows_pad // row_block)
    bytes_accessed = 4 * N * hw_pad + 4 * 4 * N * hw_pad       # 1 f32 read + 4 f32 writes / px

    out = pl.pallas_call(
        _affine_kernel,
        out_shape=jax.ShapeDtypeStruct((N, 4, rows_pad, LANE), jnp.float32),
        grid=grid,
        in_specs=[
            pl.BlockSpec((1, 1, row_block, LANE), lambda n, s: (n, 0, s, 0)),
            pl.BlockSpec(memory_space=pltpu.MemorySpace.SMEM),   # w_eff (4,)
            pl.BlockSpec(memory_space=pltpu.MemorySpace.SMEM),   # b_eff (4,)
        ],
        out_specs=pl.BlockSpec((1, 4, row_block, LANE), lambda n, s: (n, 0, s, 0)),
        compiler_params=pltpu.CompilerParams(
            dimension_semantics=("parallel", "parallel"),
            vmem_limit_bytes=32 << 20),
        cost_estimate=pl.CostEstimate(
            flops=2 * 4 * N * hw_pad,
            transcendentals=0,
            bytes_accessed=bytes_accessed),
    )(x_tiled, w_eff, b_eff)

    out = out.reshape(N, 4, hw_pad)
    if hw_pad != HW:
        out = out[:, :, :HW]
    return out.reshape(N, 4, H, W)


def init_params(key):
    """Deterministic init mimicking ConvTranspose2d(in, out, 1) shapes.
    Weight stored as (C_in, C_out) matrix (== PyTorch weight[:, :, 0, 0])."""
    def one(key, cin, cout):
        k1, k2 = jax.random.split(key)
        bound = 1.0 / (cin ** 0.5)
        w = jax.random.uniform(k1, (cin, cout), jnp.float32, -bound, bound)
        b = jax.random.uniform(k2, (cout,), jnp.float32, -bound, bound)
        return w, b
    k1, k2, k3 = jax.random.split(key, 3)
    return (one(k1, 1, 2), one(k2, 2, 3), one(k3, 3, 4))


def reference_forward(x_nchw, params):
    """Pure-JAX reference of the PyTorch module (sequential 1x1 transposed convs)."""
    (w1, b1), (w2, b2), (w3, b3) = params
    h = jnp.einsum('nihw,io->nohw', x_nchw, w1) + b1[None, :, None, None]
    h = jnp.einsum('nihw,io->nohw', h, w2) + b2[None, :, None, None]
    h = jnp.einsum('nihw,io->nohw', h, w3) + b3[None, :, None, None]
    # x4 = h > 0; x5 = h * 1.0; where(x4, h, x5)  == identity
    return jnp.where(h > 0.0, h, h * 1.0)


if __name__ == "__main__":
    key = jax.random.PRNGKey(0)
    kx, kp = jax.random.split(key)
    x = jax.random.normal(kx, (2, 1, 16, 16), jnp.float32)
    params = init_params(kp)

    y = model_forward(x, params)
    y = jax.block_until_ready(y)

    y_ref = reference_forward(x, params)
    assert y.shape == (2, 4, 16, 16)
    assert jnp.allclose(y, y_ref, atol=1e-5, rtol=1e-5)
    print("KERNEL_OK")
</pallas_src>

<mosaic_0001>
module attributes {stable_mosaic.version = 11 : i64} {
  func.func @_affine_kernel(%arg0: i32, %arg1: i32, %arg2: memref<1x1x2x128xf32, #tpu.memory_space<vmem>>, %arg3: memref<4xf32, #tpu.memory_space<smem>>, %arg4: memref<4xf32, #tpu.memory_space<smem>>, %arg5: memref<1x4x2x128xf32, #tpu.memory_space<vmem>>) attributes {dimension_semantics = [#tpu.dimension_semantics<parallel>, #tpu.dimension_semantics<parallel>], iteration_bounds = array<i64: 2, 1>, scalar_prefetch = 0 : i64, scratch_operands = 0 : i64, tpu.core_type = #tpu.core_type<tc>, window_params = [{transform_indices = @transform_0, window_bounds = array<i64: 1, 1, 2, 128>}, {transform_indices = @transform_1, window_bounds = array<i64: 4>}, {transform_indices = @transform_2, window_bounds = array<i64: 4>}, {transform_indices = @transform_3, window_bounds = array<i64: 1, 4, 2, 128>}]} {
    %c0 = arith.constant 0 : index
    %c0_0 = arith.constant 0 : index
    %c0_1 = arith.constant 0 : index
    %c0_2 = arith.constant 0 : index
    %0 = vector.load %arg2[%c0, %c0_0, %c0_1, %c0_2] : memref<1x1x2x128xf32, #tpu.memory_space<vmem>>, vector<1x1x2x128xf32>
    %1 = vector.shape_cast %0 : vector<1x1x2x128xf32> to vector<2x128xf32>
    %c0_3 = arith.constant 0 : index
    %2 = memref.load %arg3[%c0_3] : memref<4xf32, #tpu.memory_space<smem>>
    %3 = vector.broadcast %2 : f32 to vector<2x128xf32>
    %4 = arith.mulf %1, %3 : vector<2x128xf32>
    %c0_4 = arith.constant 0 : index
    %5 = memref.load %arg4[%c0_4] : memref<4xf32, #tpu.memory_space<smem>>
    %6 = vector.broadcast %5 : f32 to vector<2x128xf32>
    %7 = arith.addf %4, %6 : vector<2x128xf32>
    %c0_5 = arith.constant 0 : index
    %c0_6 = arith.constant 0 : index
    %c0_7 = arith.constant 0 : index
    %c0_8 = arith.constant 0 : index
    %8 = vector.load %arg5[%c0_5, %c0_6, %c0_7, %c0_8] : memref<1x4x2x128xf32, #tpu.memory_space<vmem>>, vector<1x1x2x128xf32>
    %9 = vector.shape_cast %8 : vector<1x1x2x128xf32> to vector<2x128xf32>
    %10 = vector.shape_cast %7 : vector<2x128xf32> to vector<1x1x2x128xf32>
    tpu.vector_store %arg5[%c0_5, %c0_6, %c0_7, %c0_8], %10 {strides = array<i32>} : memref<1x4x2x128xf32, #tpu.memory_space<vmem>>, vector<1x1x2x128xf32>,
    %c1 = arith.constant 1 : index
    %11 = memref.load %arg3[%c1] : memref<4xf32, #tpu.memory_space<smem>>
    %12 = vector.broadcast %11 : f32 to vector<2x128xf32>
    %13 = arith.mulf %1, %12 : vector<2x128xf32>
    %c1_9 = arith.constant 1 : index
    %14 = memref.load %arg4[%c1_9] : memref<4xf32, #tpu.memory_space<smem>>
    %15 = vector.broadcast %14 : f32 to vector<2x128xf32>
    %16 = arith.addf %13, %15 : vector<2x128xf32>
    %c0_10 = arith.constant 0 : index
    %c1_11 = arith.constant 1 : index
    %c0_12 = arith.constant 0 : index
    %c0_13 = arith.constant 0 : index
    %17 = vector.load %arg5[%c0_10, %c1_11, %c0_12, %c0_13] : memref<1x4x2x128xf32, #tpu.memory_space<vmem>>, vector<1x1x2x128xf32>
    %18 = vector.shape_cast %17 : vector<1x1x2x128xf32> to vector<2x128xf32>
    %19 = vector.shape_cast %16 : vector<2x128xf32> to vector<1x1x2x128xf32>
    tpu.vector_store %arg5[%c0_10, %c1_11, %c0_12, %c0_13], %19 {strides = array<i32>} : memref<1x4x2x128xf32, #tpu.memory_space<vmem>>, vector<1x1x2x128xf32>,
    %c2 = arith.constant 2 : index
    %20 = memref.load %arg3[%c2] : memref<4xf32, #tpu.memory_space<smem>>
    %21 = vector.broadcast %20 : f32 to vector<2x128xf32>
    %22 = arith.mulf %1, %21 : vector<2x128xf32>
    %c2_14 = arith.constant 2 : index
    %23 = memref.load %arg4[%c2_14] : memref<4xf32, #tpu.memory_space<smem>>
    %24 = vector.broadcast %23 : f32 to vector<2x128xf32>
    %25 = arith.addf %22, %24 : vector<2x128xf32>
    %c0_15 = arith.constant 0 : index
    %c2_16 = arith.constant 2 : index
    %c0_17 = arith.constant 0 : index
    %c0_18 = arith.constant 0 : index
    %26 = vector.load %arg5[%c0_15, %c2_16, %c0_17, %c0_18] : memref<1x4x2x128xf32, #tpu.memory_space<vmem>>, vector<1x1x2x128xf32>
    %27 = vector.shape_cast %26 : vector<1x1x2x128xf32> to vector<2x128xf32>
    %28 = vector.shape_cast %25 : vector<2x128xf32> to vector<1x1x2x128xf32>
    tpu.vector_store %arg5[%c0_15, %c2_16, %c0_17, %c0_18], %28 {strides = array<i32>} : memref<1x4x2x128xf32, #tpu.memory_space<vmem>>, vector<1x1x2x128xf32>,
    %c3 = arith.constant 3 : index
    %29 = memref.load %arg3[%c3] : memref<4xf32, #tpu.memory_space<smem>>
    %30 = vector.broadcast %29 : f32 to vector<2x128xf32>
    %31 = arith.mulf %1, %30 : vector<2x128xf32>
    %c3_19 = arith.constant 3 : index
    %32 = memref.load %arg4[%c3_19] : memref<4xf32, #tpu.memory_space<smem>>
    %33 = vector.broadcast %32 : f32 to vector<2x128xf32>
    %34 = arith.addf %31, %33 : vector<2x128xf32>
    %c0_20 = arith.constant 0 : index
    %c3_21 = arith.constant 3 : index
    %c0_22 = arith.constant 0 : index
    %c0_23 = arith.constant 0 : index
    %35 = vector.load %arg5[%c0_20, %c3_21, %c0_22, %c0_23] : memref<1x4x2x128xf32, #tpu.memory_space<vmem>>, vector<1x1x2x128xf32>
    %36 = vector.shape_cast %35 : vector<1x1x2x128xf32> to vector<2x128xf32>
    %37 = vector.shape_cast %34 : vector<2x128xf32> to vector<1x1x2x128xf32>
    tpu.vector_store %arg5[%c0_20, %c3_21, %c0_22, %c0_23], %37 {strides = array<i32>} : memref<1x4x2x128xf32, #tpu.memory_space<vmem>>, vector<1x1x2x128xf32>,
    return
  }
  func.func @transform_0(%arg0: i32, %arg1: i32) -> (i32, i32, i32, i32) {
    %c0_i32 = arith.constant 0 : i32
    %c0_i32_0 = arith.constant 0 : i32
    %c0_i32_1 = arith.constant 0 : i32
    return %arg0, %c0_i32, %arg1, %c0_i32_0 : i32, i32, i32, i32
  }
  func.func @transform_1(%arg0: i32, %arg1: i32) -> i32 {
    %c0_i32 = arith.constant 0 : i32
    %c0_i32_0 = arith.constant 0 : i32
    return %c0_i32 : i32
  }
  func.func @transform_2(%arg0: i32, %arg1: i32) -> i32 {
    %c0_i32 = arith.constant 0 : i32
    %c0_i32_0 = arith.constant 0 : i32
    return %c0_i32 : i32
  }
  func.func @transform_3(%arg0: i32, %arg1: i32) -> (i32, i32, i32, i32) {
    %c0_i32 = arith.constant 0 : i32
    %c0_i32_0 = arith.constant 0 : i32
    %c0_i32_1 = arith.constant 0 : i32
    return %arg0, %c0_i32, %arg1, %c0_i32_0 : i32, i32, i32, i32
  }
}

</mosaic_0001>

<llo_original>
// kernel: tpu_custom_call.1
$region0: #{tpu_custom_call.1}
  #allocation0 [shape = 'u32[]', space=smem, size = 0x4, offset = 0x4, fixed_abs, tag = 'smem constant byte address 0x4 - core index']
  #allocation1 [shape = 'u32[144,128]{1,0:T(1,128)}', space=vmem, size = 0x12000, scoped, tag = 'internal scratch']
  %s0 = inlined_call_operand.hbm [shape: f32[2,1,2,128], index: 0, kind: input, shape index: {}]
  %s1 = inlined_call_operand.vmem [shape: f32[4], index: 1, kind: input, shape index: {}]
  %s2 = inlined_call_operand.vmem [shape: f32[4], index: 2, kind: input, shape index: {}]
  %s3 = inlined_call_operand.hbm [shape: f32[2,4,2,128], index: 3, kind: output, shape index: {}]
  %s4 = sld [smem:[#allocation0]]
  $region57: #{tpu_custom_call.1} parent=0
    _
  %s6 = ssub.s32 1, %s4
  %s7 = scalar_select 0, %s6, %s4
  $region1: #{tpu_custom_call.1} parent=0
    #allocation2 [shape = 'u8[2048]{0}', space=vmem, size = 0x800, scoped, tag = 'input window, operand 0']
    #allocation3 [shape = 's32[2]{0}', space=sflag, size = 0x8, scoped, tag = 'scoped memory for tpu_custom_call.1']
    #allocation4 [shape = 's32[2]{0}', space=sflag, size = 0x8, scoped, tag = 'scoped memory for tpu_custom_call.1']
    #allocation5 [shape = 's32[2]{0}', space=sflag, size = 0x8, scoped, tag = 'scoped memory for tpu_custom_call.1']
    #allocation6 [shape = 'u8[512]{0}', space=smem, size = 0x200, scoped, tag = 'input window, operand 1, single buffered']
    #allocation7 [shape = 'u8[512]{0}', space=smem, size = 0x200, scoped, tag = 'input window, operand 2, single buffered']
    #allocation8 [shape = 's32[1]{0}', space=sflag, size = 0x4, scoped, tag = 'scoped memory for tpu_custom_call.1']
    #allocation9 [shape = 'u8[8192]{0}', space=vmem, size = 0x2000, scoped, tag = 'output window, operand 0']
    %8 = vsyncpa [#allocation3], 0
    %s9 = scalar_lea.sflag [#allocation3], 1
    %10 = vsyncpa %s9, 0
    %11 = vsyncpa [#allocation5], 0
    %12 = vsyncpa [#allocation8], 0
    %13 = vsyncpa [#allocation4], 0
    %s14 = scalar_lea.sflag [#allocation4], 1
    %15 = vsyncpa %s14, 0
    loop: start=0, step=1, limit=4
    $region2: #{tpu_custom_call.1} parent=1 // loop_pre_header
      _
    $region3: #{tpu_custom_call.1} parent=1 // loop_header
      %s17 = sphi 0, %s21
      %p18 = scmp.ge.s32.totalorder %s17, 4
      %s24 = sphi 0, %s36
      %s25 = sphi 0, %s32
      %s26 = sphi 0, %s24
      %s27 = sphi 0, %s25
      %s28 = sphi 0, %s26
      %s29 = sphi 0, %s27
      %s41 = sphi 0, %s43
      %s44 = sphi 0, %s41
      %s45 = sphi 0, %s44
      %s61 = sphi 0, %s45
      %s65 = sphi 0, %s65
      %s67 = sphi 0, %s65
      %s68 = sphi 0, %s67
      %s82 = sphi 0, %s68
      %s86 = sphi 0, %s86
      %s88 = sphi 0, %s86
      %s89 = sphi 0, %s88
      %s103 = sphi 0, %s89
      %s111 = sphi 0, %s113
      %s114 = sphi 0, %s111
      %s115 = sphi 0, %s114
      %s131 = sphi 0, %s115
    $region4: #{tpu_custom_call.1} parent=1 // loop_header_branch
      %20 = sbr.rel (%p18) target = $region8
    $region5: #{tpu_custom_call.1} parent=1 // loop_body
      %s22 = ssub.s32 %s17, 1
      %s23 = ssub.s32 %s17, 2
      %s30 = sadd.s32 1, %s25
      %p31 = scmp.ge.s32.totalorder %s30, 1
      %s32 = scalar_select %p31, 0, %s30
      %s33 = sadd.s32 1, %s24
      %s34 = scalar_select %p31, %s33, %s24
      %p35 = scmp.ge.s32.totalorder %s34, 2
      %s36 = scalar_select %p35, 0, %s34
      %s37 = ssub.s32 %s24, %s36
      %s38 = ssub.s32 %s25, %s32
      %s39 = sor.u32 %s37, %s38
      %p40 = scmp.eq.s32.totalorder %s39, 0
      %s42 = sadd.s32 %s41, 1
      %s43 = scalar_select %p40, %s41, %s42
      %p46 = pneg %p40
      %p47 = scmp.eq.s32.totalorder %s17, 1
      %p48 = por %p46, %p47
      %p49 = scmp.ne.s32.totalorder %s41, %s44
      %p50 = scmp.eq.s32.totalorder %s17, 0
      %p51 = por %p49, %p50
      %p52 = scmp.ne.s32.totalorder %s41, %s44
      %p53 = scmp.eq.s32.totalorder %s22, 1
      %p54 = por %p52, %p53
      %p55 = scmp.ne.s32.totalorder %s44, %s45
      %p56 = scmp.eq.s32.totalorder %s22, 0
      %p57 = por %p55, %p56
      %p58 = scmp.ne.s32.totalorder %s44, %s45
      %p59 = scmp.eq.s32.totalorder %s23, 1
      %p60 = por %p58, %p59
      %p62 = scmp.ne.s32.totalorder %s45, %s61
      %p63 = scmp.eq.s32.totalorder %s23, 0
      %p64 = por %p62, %p63
      %s66 = sadd.s32 %s65, 1
      %p69 = scmp.eq.s32.totalorder %s17, 1
      %p70 = scmp.ne.s32.totalorder %s65, %s67
      %p71 = scmp.eq.s32.totalorder %s17, 0
      %p72 = por %p70, %p71
      %p73 = scmp.ne.s32.totalorder %s65, %s67
      %p74 = scmp.eq.s32.totalorder %s22, 1
      %p75 = por %p73, %p74
      %p76 = scmp.ne.s32.totalorder %s67, %s68
      %p77 = scmp.eq.s32.totalorder %s22, 0
      %p78 = por %p76, %p77
      %p79 = scmp.ne.s32.totalorder %s67, %s68
      %p80 = scmp.eq.s32.totalorder %s23, 1
      %p81 = por %p79, %p80
      %p83 = scmp.ne.s32.totalorder %s68, %s82
      %p84 = scmp.eq.s32.totalorder %s23, 0
      %p85 = por %p83, %p84
      %s87 = sadd.s32 %s86, 1
      %p90 = scmp.eq.s32.totalorder %s17, 1
      %p91 = scmp.ne.s32.totalorder %s86, %s88
      %p92 = scmp.eq.s32.totalorder %s17, 0
      %p93 = por %p91, %p92
      %p94 = scmp.ne.s32.totalorder %s86, %s88
      %p95 = scmp.eq.s32.totalorder %s22, 1
      %p96 = por %p94, %p95
      %p97 = scmp.ne.s32.totalorder %s88, %s89
      %p98 = scmp.eq.s32.totalorder %s22, 0
      %p99 = por %p97, %p98
      %p100 = scmp.ne.s32.totalorder %s88, %s89
      %p101 = scmp.eq.s32.totalorder %s23, 1
      %p102 = por %p100, %p101
      %p104 = scmp.ne.s32.totalorder %s89, %s103
      %p105 = scmp.eq.s32.totalorder %s23, 0
      %p106 = por %p104, %p105
      %s107 = ssub.s32 %s24, %s36
      %s108 = ssub.s32 %s25, %s32
      %s109 = sor.u32 %s107, %s108
      %p110 = scmp.eq.s32.totalorder %s109, 0
      %s112 = sadd.s32 %s111, 1
      %s113 = scalar_select %p110, %s111, %s112
      %p116 = pneg %p110
      %p117 = scmp.eq.s32.totalorder %s17, 1
      %p118 = por %p116, %p117
      %p119 = scmp.ne.s32.totalorder %s111, %s114
      %p120 = scmp.eq.s32.totalorder %s17, 0
      %p121 = por %p119, %p120
      %p122 = scmp.ne.s32.totalorder %s111, %s114
      %p123 = scmp.eq.s32.totalorder %s22, 1
      %p124 = por %p122, %p123
      %p125 = scmp.ne.s32.totalorder %s114, %s115
      %p126 = scmp.eq.s32.totalorder %s22, 0
      %p127 = por %p125, %p126
      %p128 = scmp.ne.s32.totalorder %s114, %s115
      %p129 = scmp.eq.s32.totalorder %s23, 1
      %p130 = por %p128, %p129
      %p132 = scmp.ne.s32.totalorder %s115, %s131
      %p133 = scmp.eq.s32.totalorder %s23, 0
      %p134 = por %p132, %p133
      %p135 = scmp.le.s32.totalorder 1, %s17
      %p136 = scmp.lt.s32.totalorder %s17, 3
      %p137 = pnand %p135, %p136
      %p138 = pneg %p137
      // Predicated region
      $region9: #{tpu_custom_call.1} parent=5 // pred_check
        _
      $region10: #{tpu_custom_call.1} parent=5 // pred_check_branch
        %140 = sbr.rel (%p137) target = $region12
      $region11: #{tpu_custom_call.1} parent=5 // pred_region
        %s141 = ssub.s32 %s17, 1
        // Predicated region
        $region13: #{tpu_custom_call.1} parent=11 // pred_check
          %p142 = pneg %p78
        $region14: #{tpu_custom_call.1} parent=11 // pred_check_branch
          %144 = sbr.rel (%p142) target = $region16
        $region15: #{tpu_custom_call.1} parent=11 // pred_region
          %s146 = ssub.s32 16, 16
          %147 = vsyncadd [#allocation5], %s146
          %s149 = sshll.u32 %s1, 4
          %s150 = int_to_ptr.vmem [resolvable:$true] %s149
          %152 = dma.vmem_to_smem %s150, 16, [#allocation6], [#allocation5]
        $region16: #{tpu_custom_call.1} parent=11 // pred_fallthru
          _
        // Predicated region
        $region17: #{tpu_custom_call.1} parent=11 // pred_check
          %p153 = pneg %p99
        $region18: #{tpu_custom_call.1} parent=11 // pred_check_branch
          %155 = sbr.rel (%p153) target = $region20
        $region19: #{tpu_custom_call.1} parent=11 // pred_region
          %s157 = ssub.s32 16, 16
          %158 = vsyncadd [#allocation8], %s157
          %s160 = sshll.u32 %s2, 4
          %s161 = int_to_ptr.vmem [resolvable:$true] %s160
          %163 = dma.vmem_to_smem %s161, 16, [#allocation7], [#allocation8]
        $region20: #{tpu_custom_call.1} parent=11 // pred_fallthru
          _
      $region12: #{tpu_custom_call.1} parent=5 // pred_fallthru
        _
      %p164 = scmp.lt.s32.totalorder %s17, 2
      // Predicated region
      $region21: #{tpu_custom_call.1} parent=5 // pred_check
        %p165 = pneg %p164
      $region22: #{tpu_custom_call.1} parent=5 // pred_check_branch
        %167 = sbr.rel (%p165) target = $region24
      $region23: #{tpu_custom_call.1} parent=5 // pred_region
        // Predicated region
        $region25: #{tpu_custom_call.1} parent=23 // pred_check
          %p168 = pneg %p51
        $region26: #{tpu_custom_call.1} parent=23 // pred_check_branch
          %170 = sbr.rel (%p168) target = $region28
        $region27: #{tpu_custom_call.1} parent=23 // pred_region
          %s171 = sand.u32 %s41, 1
          %s172 = scalar_lea.sflag [#allocation3], %s171
          %s173 = sand.u32 %s41, 1
          %s174 = smul.addr %s173, 2
          %s175 = scalar_lea.vmem [#allocation2], %s174
          %s177 = ssub.s32 32, 32
          %178 = vsyncadd %s172, %s177
          %s179 = sadd.s32 %s25, %s24
          %s180 = smul.addr %s179, 32
          %s181 = scalar_lea.hbm %s0, %s180
          %s183 = sshll.u32 %s175, 4
          %s184 = int_to_ptr.vmem [resolvable:$true] %s183
          %186 = dma.hbm_to_vmem [thread:$0]  %s181, 32, %s184, %s172
        $region28: #{tpu_custom_call.1} parent=23 // pred_fallthru
          _
      $region24: #{tpu_custom_call.1} parent=5 // pred_fallthru
        _
      %p187 = scmp.le.s32.totalorder 1, %s17
      %p188 = scmp.lt.s32.totalorder %s17, 3
      %p189 = pnand %p187, %p188
      %p190 = pneg %p189
      // Predicated region
      $region29: #{tpu_custom_call.1} parent=5 // pred_check
        _
      $region30: #{tpu_custom_call.1} parent=5 // pred_check_branch
        %192 = sbr.rel (%p189) target = $region32
      $region31: #{tpu_custom_call.1} parent=5 // pred_region
        %s193 = ssub.s32 %s17, 1
        %s194 = sand.u32 %s44, 1
        %s195 = scalar_lea.sflag [#allocation3], %s194
        %s196 = sand.u32 %s44, 1
        %s197 = smul.addr %s196, 2
        %s198 = scalar_lea.vmem [#allocation2], %s197
        // Predicated region
        $region33: #{tpu_custom_call.1} parent=31 // pred_check
          %p199 = pneg %p57
        $region34: #{tpu_custom_call.1} parent=31 // pred_check_branch
          %201 = sbr.rel (%p199) target = $region36
        $region35: #{tpu_custom_call.1} parent=31 // pred_region
          %202 = dma.done %s195, 32
        $region36: #{tpu_custom_call.1} parent=31 // pred_fallthru
          _
        // Predicated region
        $region37: #{tpu_custom_call.1} parent=31 // pred_check
          %p203 = pneg %p78
        $region38: #{tpu_custom_call.1} parent=31 // pred_check_branch
          %205 = sbr.rel (%p203) target = $region40
        $region39: #{tpu_custom_call.1} parent=31 // pred_region
          %206 = dma.done [#allocation5], 16
        $region40: #{tpu_custom_call.1} parent=31 // pred_fallthru
          _
        // Predicated region
        $region41: #{tpu_custom_call.1} parent=31 // pred_check
          %p207 = pneg %p99
        $region42: #{tpu_custom_call.1} parent=31 // pred_check_branch
          %209 = sbr.rel (%p207) target = $region44
        $region43: #{tpu_custom_call.1} parent=31 // pred_region
          %210 = dma.done [#allocation8], 16
        $region44: #{tpu_custom_call.1} parent=31 // pred_fallthru
          _
        %211 = sfence
        %s212 = sand.u32 %s44, 1
        %s213 = scalar_lea.sflag [#allocation3], %s212
        %s214 = sand.u32 %s44, 1
        %s215 = smul.addr %s214, 2
        %s216 = scalar_lea.vmem [#allocation2], %s215
        %p217 = pneg %p57
        %p218 = pneg %p54
        %p219 = pneg %p78
        %p220 = pneg %p75
        %p221 = pneg %p99
        %p222 = pneg %p96
        %p223 = pneg %p127
        %p224 = pneg %p124
        %s225 = sand.u32 %s114, 1
        %s226 = scalar_lea.sflag [#allocation4], %s225
        %s227 = sand.u32 %s114, 1
        %s228 = smul.addr %s227, 8
        %s229 = scalar_lea.vmem [#allocation9], %s228
        %v230 = vld [vmem:[%s198] sm:$0x3]
        %s231 = sld [smem:[#allocation6]]
        %v232 = vstv %s231
        %v233 = vmul.f32 %v230, %v232
        %s234 = sld [smem:[#allocation7]]
        %v235 = vstv %s234
        %v236 = vadd.f32 %v233, %v235
        %237 = vst [vmem:[%s229] sm:$0x3] %v236
        %s238 = sld [smem:[#allocation6 + $0x1]]
        %v239 = vstv %s238
        %v240 = vmul.f32 %v230, %v239
        %s241 = sld [smem:[#allocation7 + $0x1]]
        %v242 = vstv %s241
        %v243 = vadd.f32 %v240, %v242
        %s244 = scalar_lea.vmem %s229, 2 [#allocation9]
        %245 = vst [vmem:[%s244] sm:$0x3] %v243
        %s246 = sld [smem:[#allocation6 + $0x2]]
        %v247 = vstv %s246
        %v248 = vmul.f32 %v230, %v247
        %s249 = sld [smem:[#allocation7 + $0x2]]
        %v250 = vstv %s249
        %v251 = vadd.f32 %v248, %v250
        %s252 = scalar_lea.vmem %s229, 4 [#allocation9]
        %253 = vst [vmem:[%s252] sm:$0x3] %v251
        %s254 = sld [smem:[#allocation6 + $0x3]]
        %v255 = vstv %s254
        %v256 = vmul.f32 %v230, %v255
        %s257 = sld [smem:[#allocation7 + $0x3]]
        %v258 = vstv %s257
        %v259 = vadd.f32 %v256, %v258
        %s260 = scalar_lea.vmem %s229, 6 [#allocation9]
        %261 = vst [vmem:[%s260] sm:$0x3] %v259
        %s262 = sand.u32 %s114, 1
        %s263 = scalar_lea.sflag [#allocation4], %s262
        %s264 = sand.u32 %s114, 1
        %s265 = smul.addr %s264, 8
        %s266 = scalar_lea.vmem [#allocation9], %s265
        // Predicated region
        $region45: #{tpu_custom_call.1} parent=31 // pred_check
          %p267 = pneg %p124
        $region46: #{tpu_custom_call.1} parent=31 // pred_check_branch
          %269 = sbr.rel (%p267) target = $region48
        $region47: #{tpu_custom_call.1} parent=31 // pred_region
          %s271 = ssub.s32 128, 128
          %272 = vsyncadd %s263, %s271
          %s273 = smul.addr %s26, 4
          %s274 = sadd.s32 %s27, %s273
          %s275 = smul.addr %s274, 32
          %s276 = scalar_lea.hbm %s3, %s275
          %s277 = sshll.u32 %s266, 4
          %s278 = int_to_ptr.vmem [resolvable:$true] %s277
          %283 = dma.vmem_to_hbm [thread:$0]  %s278, 128, %s276, %s263, 32, 32, 2
        $region48: #{tpu_custom_call.1} parent=31 // pred_fallthru
          _
      $region32: #{tpu_custom_call.1} parent=5 // pred_fallthru
        _
      %p284 = scmp.le.s32.totalorder 2, %s17
      // Predicated region
      $region49: #{tpu_custom_call.1} parent=5 // pred_check
        %p285 = pneg %p284
      $region50: #{tpu_custom_call.1} parent=5 // pred_check_branch
        %287 = sbr.rel (%p285) target = $region52
      $region51: #{tpu_custom_call.1} parent=5 // pred_region
        %s288 = ssub.s32 %s17, 2
        // Predicated region
        $region53: #{tpu_custom_call.1} parent=51 // pred_check
          %p289 = pneg %p130
        $region54: #{tpu_custom_call.1} parent=51 // pred_check_branch
          %291 = sbr.rel (%p289) target = $region56
        $region55: #{tpu_custom_call.1} parent=51 // pred_region
          %s292 = sand.u32 %s115, 1
          %s293 = scalar_lea.sflag [#allocation4], %s292
          %s294 = sand.u32 %s115, 1
          %s295 = smul.addr %s294, 8
          %s296 = scalar_lea.vmem [#allocation9], %s295
          %297 = dma.done %s293, 128
        $region56: #{tpu_custom_call.1} parent=51 // pred_fallthru
          _
      $region52: #{tpu_custom_call.1} parent=5 // pred_fallthru
        _
    $region6: #{tpu_custom_call.1} parent=1 // loop_footer
      %s21 = sadd.s32 1, %s17
    $region7: #{tpu_custom_call.1} parent=1 // loop_footer_branch
      %16 = sbr.rel target = $region3
    $region8: #{tpu_custom_call.1} parent=1 // loop_exit
      _
    %298 = vsyncpa [#allocation3], 1
    %s299 = scalar_lea.sflag [#allocation3], 1
    %300 = vsyncpa %s299, 1
    %301 = vsyncpa [#allocation4], 1
    %s302 = scalar_lea.sflag [#allocation4], 1
    %303 = vsyncpa %s302, 1
    %304 = vsyncpa [#allocation5], 1
    %s305 = scalar_lea.sflag [#allocation5], 1
    %306 = vsyncpa %s305, 1
    %307 = vsyncpa [#allocation8], 1

</llo_original>
